<compile_context>
chip_gen: v6e
topology: v6e:2x2x1
jax: 0.10.0
libtpu: 0.0.40
codegen_flags: <defaults>
</compile_context>

<pallas_src>
import jax
import jax.numpy as jnp
from jax.experimental import pallas as pl
from jax.experimental.pallas import tpu as pltpu


def _fpn_kernel(x_ref, skip_ref, e_ref, w_ref, b_ref, out_ref):
    # x_ref:    (1, C_pyr,  TR, gW )  low-res pyramid rows            (VMEM)
    # skip_ref: (1, C_skip, TR, 4gW)  skip rows at output resolution  (VMEM)
    # e_ref:    (gW, 4gW)             0/1 nearest-upsample expansion  (VMEM)
    # w_ref:    (C_pyr, C_skip)       1x1 conv weight                 (SMEM)
    # b_ref:    (C_pyr,)              1x1 conv bias                   (SMEM)
    # out_ref:  (1, C_pyr, TR, 4gW)
    c_pyr = x_ref.shape[1]
    c_skip = skip_ref.shape[1]
    e = e_ref[...]                                    # hoisted, reused per channel

    for co in range(c_pyr):                           # tiny, fully unrolled
        # Fused nearest-2x upsample: each output lane selects exactly one
        # low-res element (E is 0/1 with a single 1 per column).
        xup = jnp.dot(x_ref[0, co, :, :].astype(jnp.float32), e,
                      preferred_element_type=jnp.float32)      # (TR, 4gW)
        acc = xup + b_ref[co]
        # 1x1 conv: unrolled VPU FMAs (channel counts far below MXU size).
        for ci in range(c_skip):
            acc = acc + w_ref[co, ci] * skip_ref[0, ci, :, :].astype(jnp.float32)
        out_ref[0, co, :, :] = acc.astype(out_ref.dtype)


def fpn_block(x, skip, weight, bias, *, vmem_block_budget_bytes=4 * 1024 * 1024):
    """FPNBlock.forward: out = nearest_upsample_2x(x) + conv1x1(skip).

    x:      (N, C_pyr, H, W)
    skip:   (N, C_skip, 2H, 2W)
    weight: (C_pyr, C_skip)   -- Conv2d(skip_ch, pyr_ch, k=1) weight, squeezed
    bias:   (C_pyr,)
    Returns (N, C_pyr, 2H, 2W) in x.dtype.
    """
    n, c_pyr, h, w = x.shape
    ns, c_skip, hs, ws = skip.shape
    assert ns == n and hs == 2 * h and ws == 2 * w
    assert weight.shape == (c_pyr, c_skip) and bias.shape == (c_pyr,)

    # Row grouping: g low-res rows (= 2g output rows) per super-row, chosen so
    # the lane dim 4*g*W is a multiple of 128 (lane-dense) when possible.
    g = 1
    for cand in range(1, h + 1):
        if h % cand == 0 and (4 * cand * w) % 128 == 0:
            g = cand
            break

    lane_x = g * w          # low-res super-row length
    lane_o = 4 * g * w      # output / skip super-row length
    r_total = h // g        # super-rows per image

    # Free reshapes of NCHW memory (no transposes, no data movement).
    x_v = x.reshape(n, c_pyr, r_total, lane_x)
    s_v = skip.reshape(n, c_skip, r_total, lane_o)

    # Row tile: as large as a modest VMEM budget allows (kernel is HBM-bound).
    bytes_per_row = 4 * (c_pyr * lane_x + (c_skip + c_pyr) * lane_o)
    max_rows = max(8, vmem_block_budget_bytes // max(1, bytes_per_row))
    if r_total <= max_rows:
        tr, r_pad = r_total, r_total
    else:
        tr = max(8, (max_rows // 8) * 8)
        r_pad = ((r_total + tr - 1) // tr) * tr
        if r_pad != r_total:                      # ragged: zero-pad the row axis
            x_v = jnp.pad(x_v, ((0, 0), (0, 0), (0, r_pad - r_total), (0, 0)))
            s_v = jnp.pad(s_v, ((0, 0), (0, 0), (0, r_pad - r_total), (0, 0)))

    # Constant 0/1 expansion matrix: output super-row lane j sources low-res lane
    # (j // (2W) // 2) * W + (j % (2W)) // 2   (nearest-neighbour 2x in H and W).
    j = jnp.arange(lane_o)
    src = (j // (2 * w) // 2) * w + (j % (2 * w)) // 2
    e = (jnp.arange(lane_x)[:, None] == src[None, :]).astype(jnp.float32)

    w32 = weight.astype(jnp.float32)      # SMEM scalars are 32-bit
    b32 = bias.astype(jnp.float32)

    grid = (n, r_pad // tr)

    out_v = pl.pallas_call(
        _fpn_kernel,
        out_shape=jax.ShapeDtypeStruct((n, c_pyr, r_pad, lane_o), x.dtype),
        grid_spec=pltpu.PrefetchScalarGridSpec(
            num_scalar_prefetch=0,
            grid=grid,
            in_specs=[
                pl.BlockSpec((1, c_pyr, tr, lane_x), lambda nb, rb: (nb, 0, rb, 0)),
                pl.BlockSpec((1, c_skip, tr, lane_o), lambda nb, rb: (nb, 0, rb, 0)),
                pl.BlockSpec((lane_x, lane_o), lambda nb, rb: (0, 0)),
                pl.BlockSpec(memory_space=pltpu.MemorySpace.SMEM),   # weight
                pl.BlockSpec(memory_space=pltpu.MemorySpace.SMEM),   # bias
            ],
            out_specs=pl.BlockSpec((1, c_pyr, tr, lane_o),
                                   lambda nb, rb: (nb, 0, rb, 0)),
        ),
        compiler_params=pltpu.CompilerParams(
            dimension_semantics=("parallel", "parallel"),
            vmem_limit_bytes=32 * 1024 * 1024,
        ),
    )(x_v, s_v, e, w32, b32)

    if r_pad != r_total:
        out_v = out_v[:, :, :r_total, :]
    return out_v.reshape(n, c_pyr, 2 * h, 2 * w)


def _reference(x, skip, weight, bias):
    # Pure-JAX reference of the PyTorch forward.
    x_up = jnp.repeat(jnp.repeat(x, 2, axis=2), 2, axis=3)
    conv = jnp.einsum("oc,nchw->nohw", weight, skip) + bias[None, :, None, None]
    return x_up + conv


if __name__ == "__main__":
    key = jax.random.PRNGKey(0)
    k_x, k_s, k_w, k_b = jax.random.split(key, 4)

    pyramid_channels, skip_channels = 4, 8
    n, h, w = 2, 16, 16

    x = jax.random.normal(k_x, (n, pyramid_channels, h, w), dtype=jnp.float32)
    skip = jax.random.normal(k_s, (n, skip_channels, 2 * h, 2 * w), dtype=jnp.float32)

    # Conv2d(skip_channels, pyramid_channels, kernel_size=1) params, PyTorch
    # weight layout (out_ch, in_ch) with the 1x1 spatial dims squeezed.
    bound = 1.0 / jnp.sqrt(jnp.float32(skip_channels))
    weight = jax.random.uniform(k_w, (pyramid_channels, skip_channels),
                                minval=-bound, maxval=bound, dtype=jnp.float32)
    bias = jax.random.uniform(k_b, (pyramid_channels,),
                              minval=-bound, maxval=bound, dtype=jnp.float32)

    out = jax.block_until_ready(fpn_block(x, skip, weight, bias))
    ref = jax.block_until_ready(_reference(x, skip, weight, bias))

    assert out.shape == (n, pyramid_channels, 2 * h, 2 * w)
    assert jnp.allclose(out, ref, atol=1e-5, rtol=1e-5)
    print("KERNEL_OK")
</pallas_src>

<mosaic_0001>
module attributes {stable_mosaic.version = 11 : i64} {
  func.func @_fpn_kernel(%arg0: i32, %arg1: i32, %arg2: memref<1x4x8x32xf32, #tpu.memory_space<vmem>>, %arg3: memref<1x8x8x128xf32, #tpu.memory_space<vmem>>, %arg4: memref<32x128xf32, #tpu.memory_space<vmem>>, %arg5: memref<4x8xf32, #tpu.memory_space<smem>>, %arg6: memref<4xf32, #tpu.memory_space<smem>>, %arg7: memref<1x4x8x128xf32, #tpu.memory_space<vmem>>) attributes {dimension_semantics = [#tpu.dimension_semantics<parallel>, #tpu.dimension_semantics<parallel>], iteration_bounds = array<i64: 2, 1>, scalar_prefetch = 0 : i64, scratch_operands = 0 : i64, tpu.core_type = #tpu.core_type<tc>, window_params = [{transform_indices = @transform_0, window_bounds = array<i64: 1, 4, 8, 32>}, {transform_indices = @transform_1, window_bounds = array<i64: 1, 8, 8, 128>}, {pipeline_mode = #tpu.pipeline_mode<synchronous>, transform_indices = @transform_2, window_bounds = array<i64: 32, 128>}, {transform_indices = @transform_3, window_bounds = array<i64: 4, 8>}, {transform_indices = @transform_4, window_bounds = array<i64: 4>}, {transform_indices = @transform_5, window_bounds = array<i64: 1, 4, 8, 128>}]} {
    %c0 = arith.constant 0 : index
    %c0_0 = arith.constant 0 : index
    %0 = vector.load %arg4[%c0, %c0_0] : memref<32x128xf32, #tpu.memory_space<vmem>>, vector<32x128xf32>
    %c0_1 = arith.constant 0 : index
    %c0_2 = arith.constant 0 : index
    %c0_3 = arith.constant 0 : index
    %c0_4 = arith.constant 0 : index
    %1 = vector.load %arg2[%c0_1, %c0_2, %c0_3, %c0_4] : memref<1x4x8x32xf32, #tpu.memory_space<vmem>>, vector<1x1x8x32xf32>
    %2 = vector.shape_cast %1 : vector<1x1x8x32xf32> to vector<8x32xf32>
    %cst = arith.constant dense<0.000000e+00> : vector<8x128xf32>
    %3 = tpu.matmul %2, %0, %cst {dimension_numbers = #tpu.dot_dimension_numbers<[1], [0], [0], [1], [0, 0, 1, 1], [], []>} : vector<8x32xf32>, vector<32x128xf32>, vector<8x128xf32> -> vector<8x128xf32>
    %c0_5 = arith.constant 0 : index
    %4 = memref.load %arg6[%c0_5] : memref<4xf32, #tpu.memory_space<smem>>
    %5 = vector.broadcast %4 : f32 to vector<8x128xf32>
    %6 = arith.addf %3, %5 : vector<8x128xf32>
    %c0_6 = arith.constant 0 : index
    %c0_7 = arith.constant 0 : index
    %7 = memref.load %arg5[%c0_6, %c0_7] : memref<4x8xf32, #tpu.memory_space<smem>>
    %c0_8 = arith.constant 0 : index
    %c0_9 = arith.constant 0 : index
    %c0_10 = arith.constant 0 : index
    %c0_11 = arith.constant 0 : index
    %8 = vector.load %arg3[%c0_8, %c0_9, %c0_10, %c0_11] : memref<1x8x8x128xf32, #tpu.memory_space<vmem>>, vector<1x1x8x128xf32>
    %9 = vector.shape_cast %8 : vector<1x1x8x128xf32> to vector<8x128xf32>
    %10 = vector.broadcast %7 : f32 to vector<8x128xf32>
    %11 = arith.mulf %10, %9 : vector<8x128xf32>
    %12 = arith.addf %6, %11 : vector<8x128xf32>
    %c0_12 = arith.constant 0 : index
    %c1 = arith.constant 1 : index
    %13 = memref.load %arg5[%c0_12, %c1] : memref<4x8xf32, #tpu.memory_space<smem>>
    %c0_13 = arith.constant 0 : index
    %c1_14 = arith.constant 1 : index
    %c0_15 = arith.constant 0 : index
    %c0_16 = arith.constant 0 : index
    %14 = vector.load %arg3[%c0_13, %c1_14, %c0_15, %c0_16] : memref<1x8x8x128xf32, #tpu.memory_space<vmem>>, vector<1x1x8x128xf32>
    %15 = vector.shape_cast %14 : vector<1x1x8x128xf32> to vector<8x128xf32>
    %16 = vector.broadcast %13 : f32 to vector<8x128xf32>
    %17 = arith.mulf %16, %15 : vector<8x128xf32>
    %18 = arith.addf %12, %17 : vector<8x128xf32>
    %c0_17 = arith.constant 0 : index
    %c2 = arith.constant 2 : index
    %19 = memref.load %arg5[%c0_17, %c2] : memref<4x8xf32, #tpu.memory_space<smem>>
    %c0_18 = arith.constant 0 : index
    %c2_19 = arith.constant 2 : index
    %c0_20 = arith.constant 0 : index
    %c0_21 = arith.constant 0 : index
    %20 = vector.load %arg3[%c0_18, %c2_19, %c0_20, %c0_21] : memref<1x8x8x128xf32, #tpu.memory_space<vmem>>, vector<1x1x8x128xf32>
    %21 = vector.shape_cast %20 : vector<1x1x8x128xf32> to vector<8x128xf32>
    %22 = vector.broadcast %19 : f32 to vector<8x128xf32>
    %23 = arith.mulf %22, %21 : vector<8x128xf32>
    %24 = arith.addf %18, %23 : vector<8x128xf32>
    %c0_22 = arith.constant 0 : index
    %c3 = arith.constant 3 : index
    %25 = memref.load %arg5[%c0_22, %c3] : memref<4x8xf32, #tpu.memory_space<smem>>
    %c0_23 = arith.constant 0 : index
    %c3_24 = arith.constant 3 : index
    %c0_25 = arith.constant 0 : index
    %c0_26 = arith.constant 0 : index
    %26 = vector.load %arg3[%c0_23, %c3_24, %c0_25, %c0_26] : memref<1x8x8x128xf32, #tpu.memory_space<vmem>>, vector<1x1x8x128xf32>
    %27 = vector.shape_cast %26 : vector<1x1x8x128xf32> to vector<8x128xf32>
    %28 = vector.broadcast %25 : f32 to vector<8x128xf32>
    %29 = arith.mulf %28, %27 : vector<8x128xf32>
    %30 = arith.addf %24, %29 : vector<8x128xf32>
    %c0_27 = arith.constant 0 : index
    %c4 = arith.constant 4 : index
    %31 = memref.load %arg5[%c0_27, %c4] : memref<4x8xf32, #tpu.memory_space<smem>>
    %c0_28 = arith.constant 0 : index
    %c4_29 = arith.constant 4 : index
    %c0_30 = arith.constant 0 : index
    %c0_31 = arith.constant 0 : index
    %32 = vector.load %arg3[%c0_28, %c4_29, %c0_30, %c0_31] : memref<1x8x8x128xf32, #tpu.memory_space<vmem>>, vector<1x1x8x128xf32>
    %33 = vector.shape_cast %32 : vector<1x1x8x128xf32> to vector<8x128xf32>
    %34 = vector.broadcast %31 : f32 to vector<8x128xf32>
    %35 = arith.mulf %34, %33 : vector<8x128xf32>
    %36 = arith.addf %30, %35 : vector<8x128xf32>
    %c0_32 = arith.constant 0 : index
    %c5 = arith.constant 5 : index
    %37 = memref.load %arg5[%c0_32, %c5] : memref<4x8xf32, #tpu.memory_space<smem>>
    %c0_33 = arith.constant 0 : index
    %c5_34 = arith.constant 5 : index
    %c0_35 = arith.constant 0 : index
    %c0_36 = arith.constant 0 : index
    %38 = vector.load %arg3[%c0_33, %c5_34, %c0_35, %c0_36] : memref<1x8x8x128xf32, #tpu.memory_space<vmem>>, vector<1x1x8x128xf32>
    %39 = vector.shape_cast %38 : vector<1x1x8x128xf32> to vector<8x128xf32>
    %40 = vector.broadcast %37 : f32 to vector<8x128xf32>
    %41 = arith.mulf %40, %39 : vector<8x128xf32>
    %42 = arith.addf %36, %41 : vector<8x128xf32>
    %c0_37 = arith.constant 0 : index
    %c6 = arith.constant 6 : index
    %43 = memref.load %arg5[%c0_37, %c6] : memref<4x8xf32, #tpu.memory_space<smem>>
    %c0_38 = arith.constant 0 : index
    %c6_39 = arith.constant 6 : index
    %c0_40 = arith.constant 0 : index
    %c0_41 = arith.constant 0 : index
    %44 = vector.load %arg3[%c0_38, %c6_39, %c0_40, %c0_41] : memref<1x8x8x128xf32, #tpu.memory_space<vmem>>, vector<1x1x8x128xf32>
    %45 = vector.shape_cast %44 : vector<1x1x8x128xf32> to vector<8x128xf32>
    %46 = vector.broadcast %43 : f32 to vector<8x128xf32>
    %47 = arith.mulf %46, %45 : vector<8x128xf32>
    %48 = arith.addf %42, %47 : vector<8x128xf32>
    %c0_42 = arith.constant 0 : index
    %c7 = arith.constant 7 : index
    %49 = memref.load %arg5[%c0_42, %c7] : memref<4x8xf32, #tpu.memory_space<smem>>
    %c0_43 = arith.constant 0 : index
    %c7_44 = arith.constant 7 : index
    %c0_45 = arith.constant 0 : index
    %c0_46 = arith.constant 0 : index
    %50 = vector.load %arg3[%c0_43, %c7_44, %c0_45, %c0_46] : memref<1x8x8x128xf32, #tpu.memory_space<vmem>>, vector<1x1x8x128xf32>
    %51 = vector.shape_cast %50 : vector<1x1x8x128xf32> to vector<8x128xf32>
    %52 = vector.broadcast %49 : f32 to vector<8x128xf32>
    %53 = arith.mulf %52, %51 : vector<8x128xf32>
    %54 = arith.addf %48, %53 : vector<8x128xf32>
    %c0_47 = arith.constant 0 : index
    %c0_48 = arith.constant 0 : index
    %c0_49 = arith.constant 0 : index
    %c0_50 = arith.constant 0 : index
    %55 = vector.load %arg7[%c0_47, %c0_48, %c0_49, %c0_50] : memref<1x4x8x128xf32, #tpu.memory_space<vmem>>, vector<1x1x8x128xf32>
    %56 = vector.shape_cast %55 : vector<1x1x8x128xf32> to vector<8x128xf32>
    %57 = vector.shape_cast %54 : vector<8x128xf32> to vector<1x1x8x128xf32>
    tpu.vector_store %arg7[%c0_47, %c0_48, %c0_49, %c0_50], %57 {strides = array<i32>} : memref<1x4x8x128xf32, #tpu.memory_space<vmem>>, vector<1x1x8x128xf32>,
    %c0_51 = arith.constant 0 : index
    %c1_52 = arith.constant 1 : index
    %c0_53 = arith.constant 0 : index
    %c0_54 = arith.constant 0 : index
    %58 = vector.load %arg2[%c0_51, %c1_52, %c0_53, %c0_54] : memref<1x4x8x32xf32, #tpu.memory_space<vmem>>, vector<1x1x8x32xf32>
    %59 = vector.shape_cast %58 : vector<1x1x8x32xf32> to vector<8x32xf32>
    %cst_55 = arith.constant dense<0.000000e+00> : vector<8x128xf32>
    %60 = tpu.matmul %59, %0, %cst_55 {dimension_numbers = #tpu.dot_dimension_numbers<[1], [0], [0], [1], [0, 0, 1, 1], [], []>} : vector<8x32xf32>, vector<32x128xf32>, vector<8x128xf32> -> vector<8x128xf32>
    %c1_56 = arith.constant 1 : index
    %61 = memref.load %arg6[%c1_56] : memref<4xf32, #tpu.memory_space<smem>>
    %62 = vector.broadcast %61 : f32 to vector<8x128xf32>
    %63 = arith.addf %60, %62 : vector<8x128xf32>
    %c1_57 = arith.constant 1 : index
    %c0_58 = arith.constant 0 : index
    %64 = memref.load %arg5[%c1_57, %c0_58] : memref<4x8xf32, #tpu.memory_space<smem>>
    %c0_59 = arith.constant 0 : index
    %c0_60 = arith.constant 0 : index
    %c0_61 = arith.constant 0 : index
    %c0_62 = arith.constant 0 : index
    %65 = vector.load %arg3[%c0_59, %c0_60, %c0_61, %c0_62] : memref<1x8x8x128xf32, #tpu.memory_space<vmem>>, vector<1x1x8x128xf32>
    %66 = vector.shape_cast %65 : vector<1x1x8x128xf32> to vector<8x128xf32>
    %67 = vector.broadcast %64 : f32 to vector<8x128xf32>
    %68 = arith.mulf %67, %66 : vector<8x128xf32>
    %69 = arith.addf %63, %68 : vector<8x128xf32>
    %c1_63 = arith.constant 1 : index
    %c1_64 = arith.constant 1 : index
    %70 = memref.load %arg5[%c1_63, %c1_64] : memref<4x8xf32, #tpu.memory_space<smem>>
    %c0_65 = arith.constant 0 : index
    %c1_66 = arith.constant 1 : index
    %c0_67 = arith.constant 0 : index
    %c0_68 = arith.constant 0 : index
    %71 = vector.load %arg3[%c0_65, %c1_66, %c0_67, %c0_68] : memref<1x8x8x128xf32, #tpu.memory_space<vmem>>, vector<1x1x8x128xf32>
    %72 = vector.shape_cast %71 : vector<1x1x8x128xf32> to vector<8x128xf32>
    %73 = vector.broadcast %70 : f32 to vector<8x128xf32>
    %74 = arith.mulf %73, %72 : vector<8x128xf32>
    %75 = arith.addf %69, %74 : vector<8x128xf32>
    %c1_69 = arith.constant 1 : index
    %c2_70 = arith.constant 2 : index
    %76 = memref.load %arg5[%c1_69, %c2_70] : memref<4x8xf32, #tpu.memory_space<smem>>
    %c0_71 = arith.constant 0 : index
    %c2_72 = arith.constant 2 : index
    %c0_73 = arith.constant 0 : index
    %c0_74 = arith.constant 0 : index
    %77 = vector.load %arg3[%c0_71, %c2_72, %c0_73, %c0_74] : memref<1x8x8x128xf32, #tpu.memory_space<vmem>>, vector<1x1x8x128xf32>
    %78 = vector.shape_cast %77 : vector<1x1x8x128xf32> to vector<8x128xf32>
    %79 = vector.broadcast %76 : f32 to vector<8x128xf32>
    %80 = arith.mulf %79, %78 : vector<8x128xf32>
    %81 = arith.addf %75, %80 : vector<8x128xf32>
    %c1_75 = arith.constant 1 : index
    %c3_76 = arith.constant 3 : index
    %82 = memref.load %arg5[%c1_75, %c3_76] : memref<4x8xf32, #tpu.memory_space<smem>>
    %c0_77 = arith.constant 0 : index
    %c3_78 = arith.constant 3 : index
    %c0_79 = arith.constant 0 : index
    %c0_80 = arith.constant 0 : index
    %83 = vector.load %arg3[%c0_77, %c3_78, %c0_79, %c0_80] : memref<1x8x8x128xf32, #tpu.memory_space<vmem>>, vector<1x1x8x128xf32>
    %84 = vector.shape_cast %83 : vector<1x1x8x128xf32> to vector<8x128xf32>
    %85 = vector.broadcast %82 : f32 to vector<8x128xf32>
    %86 = arith.mulf %85, %84 : vector<8x128xf32>
    %87 = arith.addf %81, %86 : vector<8x128xf32>
    %c1_81 = arith.constant 1 : index
    %c4_82 = arith.constant 4 : index
    %88 = memref.load %arg5[%c1_81, %c4_82] : memref<4x8xf32, #tpu.memory_space<smem>>
    %c0_83 = arith.constant 0 : index
    %c4_84 = arith.constant 4 : index
    %c0_85 = arith.constant 0 : index
    %c0_86 = arith.constant 0 : index
    %89 = vector.load %arg3[%c0_83, %c4_84, %c0_85, %c0_86] : memref<1x8x8x128xf32, #tpu.memory_space<vmem>>, vector<1x1x8x128xf32>
    %90 = vector.shape_cast %89 : vector<1x1x8x128xf32> to vector<8x128xf32>
    %91 = vector.broadcast %88 : f32 to vector<8x128xf32>
    %92 = arith.mulf %91, %90 : vector<8x128xf32>
    %93 = arith.addf %87, %92 : vector<8x128xf32>
    %c1_87 = arith.constant 1 : index
    %c5_88 = arith.constant 5 : index
    %94 = memref.load %arg5[%c1_87, %c5_88] : memref<4x8xf32, #tpu.memory_space<smem>>
    %c0_89 = arith.constant 0 : index
    %c5_90 = arith.constant 5 : index
    %c0_91 = arith.constant 0 : index
    %c0_92 = arith.constant 0 : index
    %95 = vector.load %arg3[%c0_89, %c5_90, %c0_91, %c0_92] : memref<1x8x8x128xf32, #tpu.memory_space<vmem>>, vector<1x1x8x128xf32>
    %96 = vector.shape_cast %95 : vector<1x1x8x128xf32> to vector<8x128xf32>
    %97 = vector.broadcast %94 : f32 to vector<8x128xf32>
    %98 = arith.mulf %97, %96 : vector<8x128xf32>
    %99 = arith.addf %93, %98 : vector<8x128xf32>
    %c1_93 = arith.constant 1 : index
    %c6_94 = arith.constant 6 : index
    %100 = memref.load %arg5[%c1_93, %c6_94] : memref<4x8xf32, #tpu.memory_space<smem>>
    %c0_95 = arith.constant 0 : index
    %c6_96 = arith.constant 6 : index
    %c0_97 = arith.constant 0 : index
    %c0_98 = arith.constant 0 : index
    %101 = vector.load %arg3[%c0_95, %c6_96, %c0_97, %c0_98] : memref<1x8x8x128xf32, #tpu.memory_space<vmem>>, vector<1x1x8x128xf32>
    %102 = vector.shape_cast %101 : vector<1x1x8x128xf32> to vector<8x128xf32>
    %103 = vector.broadcast %100 : f32 to vector<8x128xf32>
    %104 = arith.mulf %103, %102 : vector<8x128xf32>
    %105 = arith.addf %99, %104 : vector<8x128xf32>
    %c1_99 = arith.constant 1 : index
    %c7_100 = arith.constant 7 : index
    %106 = memref.load %arg5[%c1_99, %c7_100] : memref<4x8xf32, #tpu.memory_space<smem>>
    %c0_101 = arith.constant 0 : index
    %c7_102 = arith.constant 7 : index
    %c0_103 = arith.constant 0 : index
    %c0_104 = arith.constant 0 : index
    %107 = vector.load %arg3[%c0_101, %c7_102, %c0_103, %c0_104] : memref<1x8x8x128xf32, #tpu.memory_space<vmem>>, vector<1x1x8x128xf32>
    %108 = vector.shape_cast %107 : vector<1x1x8x128xf32> to vector<8x128xf32>
    %109 = vector.broadcast %106 : f32 to vector<8x128xf32>
    %110 = arith.mulf %109, %108 : vector<8x128xf32>
    %111 = arith.addf %105, %110 : vector<8x128xf32>
    %c0_105 = arith.constant 0 : index
    %c1_106 = arith.constant 1 : index
    %c0_107 = arith.constant 0 : index
    %c0_108 = arith.constant 0 : index
    %112 = vector.load %arg7[%c0_105, %c1_106, %c0_107, %c0_108] : memref<1x4x8x128xf32, #tpu.memory_space<vmem>>, vector<1x1x8x128xf32>
    %113 = vector.shape_cast %112 : vector<1x1x8x128xf32> to vector<8x128xf32>
    %114 = vector.shape_cast %111 : vector<8x128xf32> to vector<1x1x8x128xf32>
    tpu.vector_store %arg7[%c0_105, %c1_106, %c0_107, %c0_108], %114 {strides = array<i32>} : memref<1x4x8x128xf32, #tpu.memory_space<vmem>>, vector<1x1x8x128xf32>,
    %c0_109 = arith.constant 0 : index
    %c2_110 = arith.constant 2 : index
    %c0_111 = arith.constant 0 : index
    %c0_112 = arith.constant 0 : index
    %115 = vector.load %arg2[%c0_109, %c2_110, %c0_111, %c0_112] : memref<1x4x8x32xf32, #tpu.memory_space<vmem>>, vector<1x1x8x32xf32>
    %116 = vector.shape_cast %115 : vector<1x1x8x32xf32> to vector<8x32xf32>
    %cst_113 = arith.constant dense<0.000000e+00> : vector<8x128xf32>
    %117 = tpu.matmul %116, %0, %cst_113 {dimension_numbers = #tpu.dot_dimension_numbers<[1], [0], [0], [1], [0, 0, 1, 1], [], []>} : vector<8x32xf32>, vector<32x128xf32>, vector<8x128xf32> -> vector<8x128xf32>
    %c2_114 = arith.constant 2 : index
    %118 = memref.load %arg6[%c2_114] : memref<4xf32, #tpu.memory_space<smem>>
    %119 = vector.broadcast %118 : f32 to vector<8x128xf32>
    %120 = arith.addf %117, %119 : vector<8x128xf32>
    %c2_115 = arith.constant 2 : index
    %c0_116 = arith.constant 0 : index
    %121 = memref.load %arg5[%c2_115, %c0_116] : memref<4x8xf32, #tpu.memory_space<smem>>
    %c0_117 = arith.constant 0 : index
    %c0_118 = arith.constant 0 : index
    %c0_119 = arith.constant 0 : index
    %c0_120 = arith.constant 0 : index
    %122 = vector.load %arg3[%c0_117, %c0_118, %c0_119, %c0_120] : memref<1x8x8x128xf32, #tpu.memory_space<vmem>>, vector<1x1x8x128xf32>
    %123 = vector.shape_cast %122 : vector<1x1x8x128xf32> to vector<8x128xf32>
    %124 = vector.broadcast %121 : f32 to vector<8x128xf32>
    %125 = arith.mulf %124, %123 : vector<8x128xf32>
    %126 = arith.addf %120, %125 : vector<8x128xf32>
    %c2_121 = arith.constant 2 : index
    %c1_122 = arith.constant 1 : index
    %127 = memref.load %arg5[%c2_121, %c1_122] : memref<4x8xf32, #tpu.memory_space<smem>>
    %c0_123 = arith.constant 0 : index
    %c1_124 = arith.constant 1 : index
    %c0_125 = arith.constant 0 : index
    %c0_126 = arith.constant 0 : index
    %128 = vector.load %arg3[%c0_123, %c1_124, %c0_125, %c0_126] : memref<1x8x8x128xf32, #tpu.memory_space<vmem>>, vector<1x1x8x128xf32>
    %129 = vector.shape_cast %128 : vector<1x1x8x128xf32> to vector<8x128xf32>
    %130 = vector.broadcast %127 : f32 to vector<8x128xf32>
    %131 = arith.mulf %130, %129 : vector<8x128xf32>
    %132 = arith.addf %126, %131 : vector<8x128xf32>
    %c2_127 = arith.constant 2 : index
    %c2_128 = arith.constant 2 : index
    %133 = memref.load %arg5[%c2_127, %c2_128] : memref<4x8xf32, #tpu.memory_space<smem>>
    %c0_129 = arith.constant 0 : index
    %c2_130 = arith.constant 2 : index
    %c0_131 = arith.constant 0 : index
    %c0_132 = arith.constant 0 : index
    %134 = vector.load %arg3[%c0_129, %c2_130, %c0_131, %c0_132] : memref<1x8x8x128xf32, #tpu.memory_space<vmem>>, vector<1x1x8x128xf32>
    %135 = vector.shape_cast %134 : vector<1x1x8x128xf32> to vector<8x128xf32>
    %136 = vector.broadcast %133 : f32 to vector<8x128xf32>
    %137 = arith.mulf %136, %135 : vector<8x128xf32>
    %138 = arith.addf %132, %137 : vector<8x128xf32>
    %c2_133 = arith.constant 2 : index
    %c3_134 = arith.constant 3 : index
    %139 = memref.load %arg5[%c2_133, %c3_134] : memref<4x8xf32, #tpu.memory_space<smem>>
    %c0_135 = arith.constant 0 : index
    %c3_136 = arith.constant 3 : index
    %c0_137 = arith.constant 0 : index
    %c0_138 = arith.constant 0 : index
    %140 = vector.load %arg3[%c0_135, %c3_136, %c0_137, %c0_138] : memref<1x8x8x128xf32, #tpu.memory_space<vmem>>, vector<1x1x8x128xf32>
    %141 = vector.shape_cast %140 : vector<1x1x8x128xf32> to vector<8x128xf32>
    %142 = vector.broadcast %139 : f32 to vector<8x128xf32>
    %143 = arith.mulf %142, %141 : vector<8x128xf32>
    %144 = arith.addf %138, %143 : vector<8x128xf32>
    %c2_139 = arith.constant 2 : index
    %c4_140 = arith.constant 4 : index
    %145 = memref.load %arg5[%c2_139, %c4_140] : memref<4x8xf32, #tpu.memory_space<smem>>
    %c0_141 = arith.constant 0 : index
    %c4_142 = arith.constant 4 : index
    %c0_143 = arith.constant 0 : index
    %c0_144 = arith.constant 0 : index
    %146 = vector.load %arg3[%c0_141, %c4_142, %c0_143, %c0_144] : memref<1x8x8x128xf32, #tpu.memory_space<vmem>>, vector<1x1x8x128xf32>
    %147 = vector.shape_cast %146 : vector<1x1x8x128xf32> to vector<8x128xf32>
    %148 = vector.broadcast %145 : f32 to vector<8x128xf32>
    %149 = arith.mulf %148, %147 : vector<8x128xf32>
    %150 = arith.addf %144, %149 : vector<8x128xf32>
    %c2_145 = arith.constant 2 : index
    %c5_146 = arith.constant 5 : index
    %151 = memref.load %arg5[%c2_145, %c5_146] : memref<4x8xf32, #tpu.memory_space<smem>>
    %c0_147 = arith.constant 0 : index
    %c5_148 = arith.constant 5 : index
    %c0_149 = arith.constant 0 : index
    %c0_150 = arith.constant 0 : index
    %152 = vector.load %arg3[%c0_147, %c5_148, %c0_149, %c0_150] : memref<1x8x8x128xf32, #tpu.memory_space<vmem>>, vector<1x1x8x128xf32>
    %153 = vector.shape_cast %152 : vector<1x1x8x128xf32> to vector<8x128xf32>
    %154 = vector.broadcast %151 : f32 to vector<8x128xf32>
    %155 = arith.mulf %154, %153 : vector<8x128xf32>
    %156 = arith.addf %150, %155 : vector<8x128xf32>
    %c2_151 = arith.constant 2 : index
    %c6_152 = arith.constant 6 : index
    %157 = memref.load %arg5[%c2_151, %c6_152] : memref<4x8xf32, #tpu.memory_space<smem>>
    %c0_153 = arith.constant 0 : index
    %c6_154 = arith.constant 6 : index
    %c0_155 = arith.constant 0 : index
    %c0_156 = arith.constant 0 : index
    %158 = vector.load %arg3[%c0_153, %c6_154, %c0_155, %c0_156] : memref<1x8x8x128xf32, #tpu.memory_space<vmem>>, vector<1x1x8x128xf32>
    %159 = vector.shape_cast %158 : vector<1x1x8x128xf32> to vector<8x128xf32>
    %160 = vector.broadcast %157 : f32 to vector<8x128xf32>
    %161 = arith.mulf %160, %159 : vector<8x128xf32>
    %162 = arith.addf %156, %161 : vector<8x128xf32>
    %c2_157 = arith.constant 2 : index
    %c7_158 = arith.constant 7 : index
    %163 = memref.load %arg5[%c2_157, %c7_158] : memref<4x8xf32, #tpu.memory_space<smem>>
    %c0_159 = arith.constant 0 : index
    %c7_160 = arith.constant 7 : index
    %c0_161 = arith.constant 0 : index
    %c0_162 = arith.constant 0 : index
    %164 = vector.load %arg3[%c0_159, %c7_160, %c0_161, %c0_162] : memref<1x8x8x128xf32, #tpu.memory_space<vmem>>, vector<1x1x8x128xf32>
    %165 = vector.shape_cast %164 : vector<1x1x8x128xf32> to vector<8x128xf32>
    %166 = vector.broadcast %163 : f32 to vector<8x128xf32>
    %167 = arith.mulf %166, %165 : vector<8x128xf32>
    %168 = arith.addf %162, %167 : vector<8x128xf32>
    %c0_163 = arith.constant 0 : index
    %c2_164 = arith.constant 2 : index
    %c0_165 = arith.constant 0 : index
    %c0_166 = arith.constant 0 : index
    %169 = vector.load %arg7[%c0_163, %c2_164, %c0_165, %c0_166] : memref<1x4x8x128xf32, #tpu.memory_space<vmem>>, vector<1x1x8x128xf32>
    %170 = vector.shape_cast %169 : vector<1x1x8x128xf32> to vector<8x128xf32>
    %171 = vector.shape_cast %168 : vector<8x128xf32> to vector<1x1x8x128xf32>
    tpu.vector_store %arg7[%c0_163, %c2_164, %c0_165, %c0_166], %171 {strides = array<i32>} : memref<1x4x8x128xf32, #tpu.memory_space<vmem>>, vector<1x1x8x128xf32>,
    %c0_167 = arith.constant 0 : index
    %c3_168 = arith.constant 3 : index
    %c0_169 = arith.constant 0 : index
    %c0_170 = arith.constant 0 : index
    %172 = vector.load %arg2[%c0_167, %c3_168, %c0_169, %c0_170] : memref<1x4x8x32xf32, #tpu.memory_space<vmem>>, vector<1x1x8x32xf32>
    %173 = vector.shape_cast %172 : vector<1x1x8x32xf32> to vector<8x32xf32>
    %cst_171 = arith.constant dense<0.000000e+00> : vector<8x128xf32>
    %174 = tpu.matmul %173, %0, %cst_171 {dimension_numbers = #tpu.dot_dimension_numbers<[1], [0], [0], [1], [0, 0, 1, 1], [], []>} : vector<8x32xf32>, vector<32x128xf32>, vector<8x128xf32> -> vector<8x128xf32>
    %c3_172 = arith.constant 3 : index
    %175 = memref.load %arg6[%c3_172] : memref<4xf32, #tpu.memory_space<smem>>
    %176 = vector.broadcast %175 : f32 to vector<8x128xf32>
    %177 = arith.addf %174, %176 : vector<8x128xf32>
    %c3_173 = arith.constant 3 : index
    %c0_174 = arith.constant 0 : index
    %178 = memref.load %arg5[%c3_173, %c0_174] : memref<4x8xf32, #tpu.memory_space<smem>>
    %c0_175 = arith.constant 0 : index
    %c0_176 = arith.constant 0 : index
    %c0_177 = arith.constant 0 : index
    %c0_178 = arith.constant 0 : index
    %179 = vector.load %arg3[%c0_175, %c0_176, %c0_177, %c0_178] : memref<1x8x8x128xf32, #tpu.memory_space<vmem>>, vector<1x1x8x128xf32>
    %180 = vector.shape_cast %179 : vector<1x1x8x128xf32> to vector<8x128xf32>
    %181 = vector.broadcast %178 : f32 to vector<8x128xf32>
    %182 = arith.mulf %181, %180 : vector<8x128xf32>
    %183 = arith.addf %177, %182 : vector<8x128xf32>
    %c3_179 = arith.constant 3 : index
    %c1_180 = arith.constant 1 : index
    %184 = memref.load %arg5[%c3_179, %c1_180] : memref<4x8xf32, #tpu.memory_space<smem>>
    %c0_181 = arith.constant 0 : index
    %c1_182 = arith.constant 1 : index
    %c0_183 = arith.constant 0 : index
    %c0_184 = arith.constant 0 : index
    %185 = vector.load %arg3[%c0_181, %c1_182, %c0_183, %c0_184] : memref<1x8x8x128xf32, #tpu.memory_space<vmem>>, vector<1x1x8x128xf32>
    %186 = vector.shape_cast %185 : vector<1x1x8x128xf32> to vector<8x128xf32>
    %187 = vector.broadcast %184 : f32 to vector<8x128xf32>
    %188 = arith.mulf %187, %186 : vector<8x128xf32>
    %189 = arith.addf %183, %188 : vector<8x128xf32>
    %c3_185 = arith.constant 3 : index
    %c2_186 = arith.constant 2 : index
    %190 = memref.load %arg5[%c3_185, %c2_186] : memref<4x8xf32, #tpu.memory_space<smem>>
    %c0_187 = arith.constant 0 : index
    %c2_188 = arith.constant 2 : index
    %c0_189 = arith.constant 0 : index
    %c0_190 = arith.constant 0 : index
    %191 = vector.load %arg3[%c0_187, %c2_188, %c0_189, %c0_190] : memref<1x8x8x128xf32, #tpu.memory_space<vmem>>, vector<1x1x8x128xf32>
    %192 = vector.shape_cast %191 : vector<1x1x8x128xf32> to vector<8x128xf32>
    %193 = vector.broadcast %190 : f32 to vector<8x128xf32>
    %194 = arith.mulf %193, %192 : vector<8x128xf32>
    %195 = arith.addf %189, %194 : vector<8x128xf32>
    %c3_191 = arith.constant 3 : index
    %c3_192 = arith.constant 3 : index
    %196 = memref.load %arg5[%c3_191, %c3_192] : memref<4x8xf32, #tpu.memory_space<smem>>
    %c0_193 = arith.constant 0 : index
    %c3_194 = arith.constant 3 : index
    %c0_195 = arith.constant 0 : index
    %c0_196 = arith.constant 0 : index
    %197 = vector.load %arg3[%c0_193, %c3_194, %c0_195, %c0_196] : memref<1x8x8x128xf32, #tpu.memory_space<vmem>>, vector<1x1x8x128xf32>
    %198 = vector.shape_cast %197 : vector<1x1x8x128xf32> to vector<8x128xf32>
    %199 = vector.broadcast %196 : f32 to vector<8x128xf32>
    %200 = arith.mulf %199, %198 : vector<8x128xf32>
    %201 = arith.addf %195, %200 : vector<8x128xf32>
    %c3_197 = arith.constant 3 : index
    %c4_198 = arith.constant 4 : index
    %202 = memref.load %arg5[%c3_197, %c4_198] : memref<4x8xf32, #tpu.memory_space<smem>>
    %c0_199 = arith.constant 0 : index
    %c4_200 = arith.constant 4 : index
    %c0_201 = arith.constant 0 : index
    %c0_202 = arith.constant 0 : index
    %203 = vector.load %arg3[%c0_199, %c4_200, %c0_201, %c0_202] : memref<1x8x8x128xf32, #tpu.memory_space<vmem>>, vector<1x1x8x128xf32>
    %204 = vector.shape_cast %203 : vector<1x1x8x128xf32> to vector<8x128xf32>
    %205 = vector.broadcast %202 : f32 to vector<8x128xf32>
    %206 = arith.mulf %205, %204 : vector<8x128xf32>
    %207 = arith.addf %201, %206 : vector<8x128xf32>
    %c3_203 = arith.constant 3 : index
    %c5_204 = arith.constant 5 : index
    %208 = memref.load %arg5[%c3_203, %c5_204] : memref<4x8xf32, #tpu.memory_space<smem>>
    %c0_205 = arith.constant 0 : index
    %c5_206 = arith.constant 5 : index
    %c0_207 = arith.constant 0 : index
    %c0_208 = arith.constant 0 : index
    %209 = vector.load %arg3[%c0_205, %c5_206, %c0_207, %c0_208] : memref<1x8x8x128xf32, #tpu.memory_space<vmem>>, vector<1x1x8x128xf32>
    %210 = vector.shape_cast %209 : vector<1x1x8x128xf32> to vector<8x128xf32>
    %211 = vector.broadcast %208 : f32 to vector<8x128xf32>
    %212 = arith.mulf %211, %210 : vector<8x128xf32>
    %213 = arith.addf %207, %212 : vector<8x128xf32>
    %c3_209 = arith.constant 3 : index
    %c6_210 = arith.constant 6 : index
    %214 = memref.load %arg5[%c3_209, %c6_210] : memref<4x8xf32, #tpu.memory_space<smem>>
    %c0_211 = arith.constant 0 : index
    %c6_212 = arith.constant 6 : index
    %c0_213 = arith.constant 0 : index
    %c0_214 = arith.constant 0 : index
    %215 = vector.load %arg3[%c0_211, %c6_212, %c0_213, %c0_214] : memref<1x8x8x128xf32, #tpu.memory_space<vmem>>, vector<1x1x8x128xf32>
    %216 = vector.shape_cast %215 : vector<1x1x8x128xf32> to vector<8x128xf32>
    %217 = vector.broadcast %214 : f32 to vector<8x128xf32>
    %218 = arith.mulf %217, %216 : vector<8x128xf32>
    %219 = arith.addf %213, %218 : vector<8x128xf32>
    %c3_215 = arith.constant 3 : index
    %c7_216 = arith.constant 7 : index
    %220 = memref.load %arg5[%c3_215, %c7_216] : memref<4x8xf32, #tpu.memory_space<smem>>
    %c0_217 = arith.constant 0 : index
    %c7_218 = arith.constant 7 : index
    %c0_219 = arith.constant 0 : index
    %c0_220 = arith.constant 0 : index
    %221 = vector.load %arg3[%c0_217, %c7_218, %c0_219, %c0_220] : memref<1x8x8x128xf32, #tpu.memory_space<vmem>>, vector<1x1x8x128xf32>
    %222 = vector.shape_cast %221 : vector<1x1x8x128xf32> to vector<8x128xf32>
    %223 = vector.broadcast %220 : f32 to vector<8x128xf32>
    %224 = arith.mulf %223, %222 : vector<8x128xf32>
    %225 = arith.addf %219, %224 : vector<8x128xf32>
    %c0_221 = arith.constant 0 : index
    %c3_222 = arith.constant 3 : index
    %c0_223 = arith.constant 0 : index
    %c0_224 = arith.constant 0 : index
    %226 = vector.load %arg7[%c0_221, %c3_222, %c0_223, %c0_224] : memref<1x4x8x128xf32, #tpu.memory_space<vmem>>, vector<1x1x8x128xf32>
    %227 = vector.shape_cast %226 : vector<1x1x8x128xf32> to vector<8x128xf32>
    %228 = vector.shape_cast %225 : vector<8x128xf32> to vector<1x1x8x128xf32>
    tpu.vector_store %arg7[%c0_221, %c3_222, %c0_223, %c0_224], %228 {strides = array<i32>} : memref<1x4x8x128xf32, #tpu.memory_space<vmem>>, vector<1x1x8x128xf32>,
    return
  }
  func.func @transform_0(%arg0: i32, %arg1: i32) -> (i32, i32, i32, i32) {
    %c0_i32 = arith.constant 0 : i32
    %c0_i32_0 = arith.constant 0 : i32
    %c0_i32_1 = arith.constant 0 : i32
    return %arg0, %c0_i32, %arg1, %c0_i32_0 : i32, i32, i32, i32
  }
  func.func @transform_1(%arg0: i32, %arg1: i32) -> (i32, i32, i32, i32) {
    %c0_i32 = arith.constant 0 : i32
    %c0_i32_0 = arith.constant 0 : i32
    %c0_i32_1 = arith.constant 0 : i32
    return %arg0, %c0_i32, %arg1, %c0_i32_0 : i32, i32, i32, i32
  }
  func.func @transform_2(%arg0: i32, %arg1: i32) -> (i32, i32) {
    %c0_i32 = arith.constant 0 : i32
    %c0_i32_0 = arith.constant 0 : i32
    %c0_i32_1 = arith.constant 0 : i32
    return %c0_i32, %c0_i32_0 : i32, i32
  }
  func.func @transform_3(%arg0: i32, %arg1: i32) -> (i32, i32) {
    %c0_i32 = arith.constant 0 : i32
    %c0_i32_0 = arith.constant 0 : i32
    %c0_i32_1 = arith.constant 0 : i32
    return %c0_i32, %c0_i32_0 : i32, i32
  }
  func.func @transform_4(%arg0: i32, %arg1: i32) -> i32 {
    %c0_i32 = arith.constant 0 : i32
    %c0_i32_0 = arith.constant 0 : i32
    return %c0_i32 : i32
  }
  func.func @transform_5(%arg0: i32, %arg1: i32) -> (i32, i32, i32, i32) {
    %c0_i32 = arith.constant 0 : i32
    %c0_i32_0 = arith.constant 0 : i32
    %c0_i32_1 = arith.constant 0 : i32
    return %arg0, %c0_i32, %arg1, %c0_i32_0 : i32, i32, i32, i32
  }
}

</mosaic_0001>

<llo_original>
// kernel: tpu_custom_call.1
$region0: #{tpu_custom_call.1}
  #allocation0 [shape = 'u32[]', space=smem, size = 0x4, offset = 0x4, fixed_abs, tag = 'smem constant byte address 0x4 - core index']
  #allocation1 [shape = 'u32[144,128]{1,0:T(1,128)}', space=vmem, size = 0x12000, scoped, tag = 'internal scratch']
  %s0 = inlined_call_operand.hbm [shape: f32[2,4,8,32], index: 0, kind: input, shape index: {}]
  %s1 = inlined_call_operand.hbm [shape: f32[2,8,8,128], index: 1, kind: input, shape index: {}]
  %s2 = inlined_call_operand.hbm [shape: f32[32,128], index: 2, kind: input, shape index: {}]
  %s3 = inlined_call_operand.vmem [shape: f32[4,8], index: 3, kind: input, shape index: {}]
  %s4 = inlined_call_operand.vmem [shape: f32[4], index: 4, kind: input, shape index: {}]
  %s5 = inlined_call_operand.hbm [shape: f32[2,4,8,128], index: 5, kind: output, shape index: {}]
  %s6 = sld [smem:[#allocation0]]
  $region73: #{tpu_custom_call.1} parent=0
    _
  %s8 = ssub.s32 1, %s6
  %s9 = scalar_select 0, %s8, %s6
  $region1: #{tpu_custom_call.1} parent=0
    #allocation2 [shape = 'u8[32768]{0}', space=vmem, size = 0x8000, scoped, tag = 'input window, operand 0']
    #allocation3 [shape = 's32[2]{0}', space=sflag, size = 0x8, scoped, tag = 'scoped memory for tpu_custom_call.1']
    #allocation4 [shape = 's32[2]{0}', space=sflag, size = 0x8, scoped, tag = 'scoped memory for tpu_custom_call.1']
    #allocation5 [shape = 's32[2]{0}', space=sflag, size = 0x8, scoped, tag = 'scoped memory for tpu_custom_call.1']
    #allocation6 [shape = 'u8[65536]{0}', space=vmem, size = 0x10000, scoped, tag = 'input window, operand 1']
    #allocation7 [shape = 's32[2]{0}', space=sflag, size = 0x8, scoped, tag = 'scoped memory for tpu_custom_call.1']
    #allocation8 [shape = 'u8[16384]{0}', space=vmem, size = 0x4000, scoped, tag = 'input window, operand 2, single buffered']
    #allocation9 [shape = 'u8[2048]{0}', space=smem, size = 0x800, scoped, tag = 'input window, operand 3, single buffered']
    #allocation10 [shape = 'u8[512]{0}', space=smem, size = 0x200, scoped, tag = 'input window, operand 4, single buffered']
    #allocation11 [shape = 's32[1]{0}', space=sflag, size = 0x4, scoped, tag = 'scoped memory for tpu_custom_call.1']
    #allocation12 [shape = 'u8[32768]{0}', space=vmem, size = 0x8000, scoped, tag = 'output window, operand 0']
    %10 = vsyncpa [#allocation3], 0
    %s11 = scalar_lea.sflag [#allocation3], 1
    %12 = vsyncpa %s11, 0
    %13 = vsyncpa [#allocation7], 0
    %s14 = scalar_lea.sflag [#allocation7], 1
    %15 = vsyncpa %s14, 0
    %16 = vsyncpa [#allocation5], 0
    %17 = vsyncpa [#allocation11], 0
    %18 = vsyncpa [#allocation4], 0
    %s19 = scalar_lea.sflag [#allocation4], 1
    %20 = vsyncpa %s19, 0
    loop: start=0, step=1, limit=4
    $region2: #{tpu_custom_call.1} parent=1 // loop_pre_header
      _
    $region3: #{tpu_custom_call.1} parent=1 // loop_header
      %s22 = sphi 0, %s26
      %p23 = scmp.ge.s32.totalorder %s22, 4
      %s29 = sphi 0, %s41
      %s30 = sphi 0, %s37
      %s31 = sphi 0, %s29
      %s32 = sphi 0, %s30
      %s33 = sphi 0, %s31
      %s34 = sphi 0, %s32
      %s46 = sphi 0, %s48
      %s49 = sphi 0, %s46
      %s50 = sphi 0, %s49
      %s66 = sphi 0, %s50
      %s74 = sphi 0, %s76
      %s77 = sphi 0, %s74
      %s78 = sphi 0, %s77
      %s94 = sphi 0, %s78
      %s98 = sphi 0, %s98
      %s100 = sphi 0, %s98
      %s101 = sphi 0, %s100
      %s115 = sphi 0, %s101
      %s119 = sphi 0, %s119
      %s121 = sphi 0, %s119
      %s122 = sphi 0, %s121
      %s136 = sphi 0, %s122
      %s140 = sphi 0, %s140
      %s142 = sphi 0, %s140
      %s143 = sphi 0, %s142
      %s157 = sphi 0, %s143
      %s165 = sphi 0, %s167
      %s168 = sphi 0, %s165
      %s169 = sphi 0, %s168
      %s185 = sphi 0, %s169
    $region4: #{tpu_custom_call.1} parent=1 // loop_header_branch
      %25 = sbr.rel (%p23) target = $region8
    $region5: #{tpu_custom_call.1} parent=1 // loop_body
      %s27 = ssub.s32 %s22, 1
      %s28 = ssub.s32 %s22, 2
      %s35 = sadd.s32 1, %s30
      %p36 = scmp.ge.s32.totalorder %s35, 1
      %s37 = scalar_select %p36, 0, %s35
      %s38 = sadd.s32 1, %s29
      %s39 = scalar_select %p36, %s38, %s29
      %p40 = scmp.ge.s32.totalorder %s39, 2
      %s41 = scalar_select %p40, 0, %s39
      %s42 = ssub.s32 %s29, %s41
      %s43 = ssub.s32 %s30, %s37
      %s44 = sor.u32 %s42, %s43
      %p45 = scmp.eq.s32.totalorder %s44, 0
      %s47 = sadd.s32 %s46, 1
      %s48 = scalar_select %p45, %s46, %s47
      %p51 = pneg %p45
      %p52 = scmp.eq.s32.totalorder %s22, 1
      %p53 = por %p51, %p52
      %p54 = scmp.ne.s32.totalorder %s46, %s49
      %p55 = scmp.eq.s32.totalorder %s22, 0
      %p56 = por %p54, %p55
      %p57 = scmp.ne.s32.totalorder %s46, %s49
      %p58 = scmp.eq.s32.totalorder %s27, 1
      %p59 = por %p57, %p58
      %p60 = scmp.ne.s32.totalorder %s49, %s50
      %p61 = scmp.eq.s32.totalorder %s27, 0
      %p62 = por %p60, %p61
      %p63 = scmp.ne.s32.totalorder %s49, %s50
      %p64 = scmp.eq.s32.totalorder %s28, 1
      %p65 = por %p63, %p64
      %p67 = scmp.ne.s32.totalorder %s50, %s66
      %p68 = scmp.eq.s32.totalorder %s28, 0
      %p69 = por %p67, %p68
      %s70 = ssub.s32 %s29, %s41
      %s71 = ssub.s32 %s30, %s37
      %s72 = sor.u32 %s70, %s71
      %p73 = scmp.eq.s32.totalorder %s72, 0
      %s75 = sadd.s32 %s74, 1
      %s76 = scalar_select %p73, %s74, %s75
      %p79 = pneg %p73
      %p80 = scmp.eq.s32.totalorder %s22, 1
      %p81 = por %p79, %p80
      %p82 = scmp.ne.s32.totalorder %s74, %s77
      %p83 = scmp.eq.s32.totalorder %s22, 0
      %p84 = por %p82, %p83
      %p85 = scmp.ne.s32.totalorder %s74, %s77
      %p86 = scmp.eq.s32.totalorder %s27, 1
      %p87 = por %p85, %p86
      %p88 = scmp.ne.s32.totalorder %s77, %s78
      %p89 = scmp.eq.s32.totalorder %s27, 0
      %p90 = por %p88, %p89
      %p91 = scmp.ne.s32.totalorder %s77, %s78
      %p92 = scmp.eq.s32.totalorder %s28, 1
      %p93 = por %p91, %p92
      %p95 = scmp.ne.s32.totalorder %s78, %s94
      %p96 = scmp.eq.s32.totalorder %s28, 0
      %p97 = por %p95, %p96
      %s99 = sadd.s32 %s98, 1
      %p102 = scmp.eq.s32.totalorder %s22, 1
      %p103 = scmp.ne.s32.totalorder %s98, %s100
      %p104 = scmp.eq.s32.totalorder %s22, 0
      %p105 = por %p103, %p104
      %p106 = scmp.ne.s32.totalorder %s98, %s100
      %p107 = scmp.eq.s32.totalorder %s27, 1
      %p108 = por %p106, %p107
      %p109 = scmp.ne.s32.totalorder %s100, %s101
      %p110 = scmp.eq.s32.totalorder %s27, 0
      %p111 = por %p109, %p110
      %p112 = scmp.ne.s32.totalorder %s100, %s101
      %p113 = scmp.eq.s32.totalorder %s28, 1
      %p114 = por %p112, %p113
      %p116 = scmp.ne.s32.totalorder %s101, %s115
      %p117 = scmp.eq.s32.totalorder %s28, 0
      %p118 = por %p116, %p117
      %s120 = sadd.s32 %s119, 1
      %p123 = scmp.eq.s32.totalorder %s22, 1
      %p124 = scmp.ne.s32.totalorder %s119, %s121
      %p125 = scmp.eq.s32.totalorder %s22, 0
      %p126 = por %p124, %p125
      %p127 = scmp.ne.s32.totalorder %s119, %s121
      %p128 = scmp.eq.s32.totalorder %s27, 1
      %p129 = por %p127, %p128
      %p130 = scmp.ne.s32.totalorder %s121, %s122
      %p131 = scmp.eq.s32.totalorder %s27, 0
      %p132 = por %p130, %p131
      %p133 = scmp.ne.s32.totalorder %s121, %s122
      %p134 = scmp.eq.s32.totalorder %s28, 1
      %p135 = por %p133, %p134
      %p137 = scmp.ne.s32.totalorder %s122, %s136
      %p138 = scmp.eq.s32.totalorder %s28, 0
      %p139 = por %p137, %p138
      %s141 = sadd.s32 %s140, 1
      %p144 = scmp.eq.s32.totalorder %s22, 1
      %p145 = scmp.ne.s32.totalorder %s140, %s142
      %p146 = scmp.eq.s32.totalorder %s22, 0
      %p147 = por %p145, %p146
      %p148 = scmp.ne.s32.totalorder %s140, %s142
      %p149 = scmp.eq.s32.totalorder %s27, 1
      %p150 = por %p148, %p149
      %p151 = scmp.ne.s32.totalorder %s142, %s143
      %p152 = scmp.eq.s32.totalorder %s27, 0
      %p153 = por %p151, %p152
      %p154 = scmp.ne.s32.totalorder %s142, %s143
      %p155 = scmp.eq.s32.totalorder %s28, 1
      %p156 = por %p154, %p155
      %p158 = scmp.ne.s32.totalorder %s143, %s157
      %p159 = scmp.eq.s32.totalorder %s28, 0
      %p160 = por %p158, %p159
      %s161 = ssub.s32 %s29, %s41
      %s162 = ssub.s32 %s30, %s37
      %s163 = sor.u32 %s161, %s162
      %p164 = scmp.eq.s32.totalorder %s163, 0
      %s166 = sadd.s32 %s165, 1
      %s167 = scalar_select %p164, %s165, %s166
      %p170 = pneg %p164
      %p171 = scmp.eq.s32.totalorder %s22, 1
      %p172 = por %p170, %p171
      %p173 = scmp.ne.s32.totalorder %s165, %s168
      %p174 = scmp.eq.s32.totalorder %s22, 0
      %p175 = por %p173, %p174
      %p176 = scmp.ne.s32.totalorder %s165, %s168
      %p177 = scmp.eq.s32.totalorder %s27, 1
      %p178 = por %p176, %p177
      %p179 = scmp.ne.s32.totalorder %s168, %s169
      %p180 = scmp.eq.s32.totalorder %s27, 0
      %p181 = por %p179, %p180
      %p182 = scmp.ne.s32.totalorder %s168, %s169
      %p183 = scmp.eq.s32.totalorder %s28, 1
      %p184 = por %p182, %p183
      %p186 = scmp.ne.s32.totalorder %s169, %s185
      %p187 = scmp.eq.s32.totalorder %s28, 0
      %p188 = por %p186, %p187
      %p189 = scmp.le.s32.totalorder 1, %s22
      %p190 = scmp.lt.s32.totalorder %s22, 3
      %p191 = pnand %p189, %p190
      %p192 = pneg %p191
      // Predicated region
      $region9: #{tpu_custom_call.1} parent=5 // pred_check
        _
      $region10: #{tpu_custom_call.1} parent=5 // pred_check_branch
        %194 = sbr.rel (%p191) target = $region12
      $region11: #{tpu_custom_call.1} parent=5 // pred_region
        %s195 = ssub.s32 %s22, 1
        // Predicated region
        $region13: #{tpu_custom_call.1} parent=11 // pred_check
          %p196 = pneg %p111
        $region14: #{tpu_custom_call.1} parent=11 // pred_check_branch
          %198 = sbr.rel (%p196) target = $region16
        $region15: #{tpu_custom_call.1} parent=11 // pred_region
          %s200 = ssub.s32 512, 512
          %201 = vsyncadd [#allocation7], %s200
          %s202 = sshll.u32 [#allocation8], 4
          %s203 = int_to_ptr.vmem [resolvable:$true] %s202
          %208 = dma.hbm_to_vmem [thread:$0]  %s2, 512, %s203, [#allocation7], 128, 128, 8
        $region16: #{tpu_custom_call.1} parent=11 // pred_fallthru
          _
        // Predicated region
        $region17: #{tpu_custom_call.1} parent=11 // pred_check
          %p209 = pneg %p132
        $region18: #{tpu_custom_call.1} parent=11 // pred_check_branch
          %211 = sbr.rel (%p209) target = $region20
        $region19: #{tpu_custom_call.1} parent=11 // pred_region
          %s213 = ssub.s32 64, 64
          %214 = vsyncadd [#allocation5], %s213
          %s216 = sshll.u32 %s3, 4
          %s217 = int_to_ptr.vmem [resolvable:$true] %s216
          %219 = dma.vmem_to_smem %s217, 64, [#allocation9], [#allocation5]
        $region20: #{tpu_custom_call.1} parent=11 // pred_fallthru
          _
        // Predicated region
        $region21: #{tpu_custom_call.1} parent=11 // pred_check
          %p220 = pneg %p153
        $region22: #{tpu_custom_call.1} parent=11 // pred_check_branch
          %222 = sbr.rel (%p220) target = $region24
        $region23: #{tpu_custom_call.1} parent=11 // pred_region
          %s224 = ssub.s32 16, 16
          %225 = vsyncadd [#allocation11], %s224
          %s227 = sshll.u32 %s4, 4
          %s228 = int_to_ptr.vmem [resolvable:$true] %s227
          %230 = dma.vmem_to_smem %s228, 16, [#allocation10], [#allocation11]
        $region24: #{tpu_custom_call.1} parent=11 // pred_fallthru
          _
      $region12: #{tpu_custom_call.1} parent=5 // pred_fallthru
        _
      %p231 = scmp.lt.s32.totalorder %s22, 2
      // Predicated region
      $region25: #{tpu_custom_call.1} parent=5 // pred_check
        %p232 = pneg %p231
      $region26: #{tpu_custom_call.1} parent=5 // pred_check_branch
        %234 = sbr.rel (%p232) target = $region28
      $region27: #{tpu_custom_call.1} parent=5 // pred_region
        // Predicated region
        $region29: #{tpu_custom_call.1} parent=27 // pred_check
          %p235 = pneg %p56
        $region30: #{tpu_custom_call.1} parent=27 // pred_check_branch
          %237 = sbr.rel (%p235) target = $region32
        $region31: #{tpu_custom_call.1} parent=27 // pred_region
          %s238 = sand.u32 %s46, 1
          %s239 = scalar_lea.sflag [#allocation3], %s238
          %s240 = sand.u32 %s46, 1
          %s241 = smul.addr %s240, 32
          %s242 = scalar_lea.vmem [#allocation2], %s241
          %s244 = ssub.s32 512, 512
          %245 = vsyncadd %s239, %s244
          %s246 = smul.addr %s29, 4
          %s247 = sadd.s32 %s30, %s246
          %s248 = smul.addr %s247, 128
          %s249 = scalar_lea.hbm %s0, %s248
          %s250 = sshll.u32 %s242, 4
          %s251 = int_to_ptr.vmem [resolvable:$true] %s250
          %256 = dma.hbm_to_vmem [thread:$0]  %s249, 512, %s251, %s239, 128, 128, 8
        $region32: #{tpu_custom_call.1} parent=27 // pred_fallthru
          _
        // Predicated region
        $region33: #{tpu_custom_call.1} parent=27 // pred_check
          %p257 = pneg %p84
        $region34: #{tpu_custom_call.1} parent=27 // pred_check_branch
          %259 = sbr.rel (%p257) target = $region36
        $region35: #{tpu_custom_call.1} parent=27 // pred_region
          %s260 = sand.u32 %s22, 1
          %s261 = scalar_lea.sflag [#allocation7], %s260
          %s262 = sand.u32 %s74, 1
          %s263 = smul.addr %s262, 64
          %s264 = scalar_lea.vmem [#allocation6], %s263
          %s266 = ssub.s32 1024, 1024
          %267 = vsyncadd %s261, %s266
          %s268 = smul.addr %s29, 8
          %s269 = sadd.s32 %s30, %s268
          %s270 = smul.addr %s269, 128
          %s271 = scalar_lea.hbm %s1, %s270
          %s272 = sshll.u32 %s264, 4
          %s273 = int_to_ptr.vmem [resolvable:$true] %s272
          %278 = dma.hbm_to_vmem [thread:$0]  %s271, 1024, %s273, %s261, 128, 128, 8
        $region36: #{tpu_custom_call.1} parent=27 // pred_fallthru
          _
      $region28: #{tpu_custom_call.1} parent=5 // pred_fallthru
        _
      %p279 = scmp.le.s32.totalorder 1, %s22
      %p280 = scmp.lt.s32.totalorder %s22, 3
      %p281 = pnand %p279, %p280
      %p282 = pneg %p281
      // Predicated region
      $region37: #{tpu_custom_call.1} parent=5 // pred_check
        _
      $region38: #{tpu_custom_call.1} parent=5 // pred_check_branch
        %284 = sbr.rel (%p281) target = $region40
      $region39: #{tpu_custom_call.1} parent=5 // pred_region
        %s285 = ssub.s32 %s22, 1
        %s286 = sand.u32 %s49, 1
        %s287 = scalar_lea.sflag [#allocation3], %s286
        %s288 = sand.u32 %s49, 1
        %s289 = smul.addr %s288, 32
        %s290 = scalar_lea.vmem [#allocation2], %s289
        // Predicated region
        $region41: #{tpu_custom_call.1} parent=39 // pred_check
          %p291 = pneg %p62
        $region42: #{tpu_custom_call.1} parent=39 // pred_check_branch
          %293 = sbr.rel (%p291) target = $region44
        $region43: #{tpu_custom_call.1} parent=39 // pred_region
          %294 = dma.done %s287, 512
        $region44: #{tpu_custom_call.1} parent=39 // pred_fallthru
          _
        %s295 = sand.u32 %s27, 1
        %s296 = scalar_lea.sflag [#allocation7], %s295
        %s297 = sand.u32 %s77, 1
        %s298 = smul.addr %s297, 64
        %s299 = scalar_lea.vmem [#allocation6], %s298
        // Predicated region
        $region45: #{tpu_custom_call.1} parent=39 // pred_check
          %p300 = pneg %p90
        $region46: #{tpu_custom_call.1} parent=39 // pred_check_branch
          %302 = sbr.rel (%p300) target = $region48
        $region47: #{tpu_custom_call.1} parent=39 // pred_region
          %303 = dma.done %s296, 1024
        $region48: #{tpu_custom_call.1} parent=39 // pred_fallthru
          _
        // Predicated region
        $region49: #{tpu_custom_call.1} parent=39 // pred_check
          %p304 = pneg %p111
        $region50: #{tpu_custom_call.1} parent=39 // pred_check_branch
          %306 = sbr.rel (%p304) target = $region52
        $region51: #{tpu_custom_call.1} parent=39 // pred_region
          %307 = dma.done [#allocation7], 512
        $region52: #{tpu_custom_call.1} parent=39 // pred_fallthru
          _
        // Predicated region
        $region53: #{tpu_custom_call.1} parent=39 // pred_check
          %p308 = pneg %p132
        $region54: #{tpu_custom_call.1} parent=39 // pred_check_branch
          %310 = sbr.rel (%p308) target = $region56
        $region55: #{tpu_custom_call.1} parent=39 // pred_region
          %311 = dma.done [#allocation5], 64
        $region56: #{tpu_custom_call.1} parent=39 // pred_fallthru
          _
        // Predicated region
        $region57: #{tpu_custom_call.1} parent=39 // pred_check
          %p312 = pneg %p153
        $region58: #{tpu_custom_call.1} parent=39 // pred_check_branch
          %314 = sbr.rel (%p312) target = $region60
        $region59: #{tpu_custom_call.1} parent=39 // pred_region
          %315 = dma.done [#allocation11], 16
        $region60: #{tpu_custom_call.1} parent=39 // pred_fallthru
          _
        %316 = sfence
        %s317 = sand.u32 %s49, 1
        %s318 = scalar_lea.sflag [#allocation3], %s317
        %s319 = sand.u32 %s49, 1
        %s320 = smul.addr %s319, 32
        %s321 = scalar_lea.vmem [#allocation2], %s320
        %p322 = pneg %p62
        %p323 = pneg %p59
        %s324 = sand.u32 %s27, 1
        %s325 = scalar_lea.sflag [#allocation7], %s324
        %s326 = sand.u32 %s77, 1
        %s327 = smul.addr %s326, 64
        %s328 = scalar_lea.vmem [#allocation6], %s327
        %p329 = pneg %p90
        %p330 = pneg %p87
        %p331 = pneg %p111
        %p332 = pneg %p108
        %p333 = pneg %p132
        %p334 = pneg %p129
        %p335 = pneg %p153
        %p336 = pneg %p150
        %p337 = pneg %p181
        %p338 = pneg %p178
        %s339 = sand.u32 %s168, 1
        %s340 = scalar_lea.sflag [#allocation4], %s339
        %s341 = sand.u32 %s168, 1
        %s342 = smul.addr %s341, 32
        %s343 = scalar_lea.vmem [#allocation12], %s342
        %v344 = vld [vmem:[#allocation8] sm:$0xff]
        %v345 = vld [vmem:[#allocation8 + $0x8] sm:$0xff]
        %v346 = vld [vmem:[#allocation8 + $0x10] sm:$0xff]
        %v347 = vld [vmem:[#allocation8 + $0x18] sm:$0xff]
        %v348 = vld [vmem:[%s290] sm:$0xff]
        %s349 = sld [smem:[#allocation10]]
        %v350 = vstv %s349
        %vm351 = vcmask 261120
        %v353 = vsel %vm351, %v348, 0
        %355 = vmatprep.subr.mxu0 0.0
        %356 = vmatpush1.msra.mxu0 0.0
        %357 = vmatprep.subr.mxu0 0.0
        %358 = vmatpush1.msra.mxu0 0.0
        %359 = vmatprep.subr.mxu0 0.0
        %360 = vmatpush1.msra.mxu0 0.0
        %361 = vmatprep.subr.mxu0 0.0
        %362 = vmatpush1.msra.mxu0 0.0
        %363 = vmatprep.subr.mxu0 0.0
        %364 = vmatpush1.msra.mxu0 0.0
        %365 = vmatprep.subr.mxu0 0.0
        %366 = vmatpush1.msra.mxu0 0.0
        %367 = vmatprep.subr.mxu0 0.0
        %368 = vmatpush1.msra.mxu0 0.0
        %369 = vmatprep.subr.mxu0 0.0
        %370 = vmatpush1.msra.mxu0 0.0
        %371 = vmatprep.subr.mxu0 0.0
        %372 = vmatpush1.msra.mxu0 0.0
        %373 = vmatprep.subr.mxu0 0.0
        %374 = vmatpush1.msra.mxu0 0.0
        %375 = vmatprep.subr.mxu0 0.0
        %376 = vmatpush1.msra.mxu0 0.0
        %377 = vmatprep.subr.mxu0 0.0
        %378 = vmatpush1.msra.mxu0 0.0
        %379 = vmatprep.subr.mxu0 0.0
        %380 = vmatpush1.msra.mxu0 %v347
        %381 = vmatprep.subr.mxu0 0.0
        %382 = vmatpush1.msra.mxu0 %v346
        %383 = vmatprep.subr.mxu0 0.0
        %384 = vmatpush1.msra.mxu0 %v345
        %385 = vmatprep.subr.mxu0 0.0
        %386 = vmatpush1.msra.mxu0 %v344
        %387 = vmatprep.subr.mxu0 0.0
        %388 = vmatpush2.msra.mxu0 0.0
        %389 = vmatprep.subr.mxu0 0.0
        %390 = vmatpush2.msra.mxu0 0.0
        %391 = vmatprep.subr.mxu0 0.0
        %392 = vmatpush2.msra.mxu0 0.0
        %393 = vmatprep.subr.mxu0 0.0
        %394 = vmatpush2.msra.mxu0 0.0
        %395 = vmatprep.subr.mxu0 0.0
        %396 = vmatpush2.msra.mxu0 0.0
        %397 = vmatprep.subr.mxu0 0.0
        %398 = vmatpush2.msra.mxu0 0.0
        %399 = vmatprep.subr.mxu0 0.0
        %400 = vmatpush2.msra.mxu0 0.0
        %401 = vmatprep.subr.mxu0 0.0
        %402 = vmatpush2.msra.mxu0 0.0
        %403 = vmatprep.subr.mxu0 0.0
        %404 = vmatpush2.msra.mxu0 0.0
        %405 = vmatprep.subr.mxu0 0.0
        %406 = vmatpush2.msra.mxu0 0.0
        %407 = vmatprep.subr.mxu0 0.0
        %408 = vmatpush2.msra.mxu0 0.0
        %409 = vmatprep.subr.mxu0 0.0
        %410 = vmatpush2.msra.mxu0 0.0
        %411 = vmatprep.subr.mxu0 0.0
        %412 = vmatpush2.msra.mxu0 0.0
        %413 = vmatprep.subr.mxu0 0.0
        %414 = vmatpush2.msra.mxu0 0.0
        %415 = vmatprep.subr.mxu0 0.0
        %416 = vmatpush2.msra.mxu0 0.0
        %417 = vmatprep.subr.mxu0 0.0
        %418 = vmatpush2.msra.mxu0 0.0
        %419 = vmatprep.mubr.f32.mxu0 0.0
        %420 = vmatmul.mubr.f32.gmra.mxu0 %v353
        %v421 = vpop.f32.mrf.mxu0
        %v422 = vadd.f32 %v350, %v421
        %v423 = vpop.f32.mrf.mxu0
        %424 = vdwg.mxu0
        %s425 = sld [smem:[#allocation9]]
        %v426 = vld [vmem:[%s299] sm:$0xff]
        %v427 = vstv %s425
        %v428 = vmul.f32 %v427, %v426
        %v429 = vadd.f32 %v422, %v428
        %s430 = sld [smem:[#allocation9 + $0x1]]
        %s431 = scalar_lea.vmem %s299, 8 [#allocation6]
        %v432 = vld [vmem:[%s431] sm:$0xff]
        %v433 = vstv %s430
        %v434 = vmul.f32 %v433, %v432
        %v435 = vadd.f32 %v429, %v434
        %s436 = sld [smem:[#allocation9 + $0x2]]
        %s437 = scalar_lea.vmem %s299, 16 [#allocation6]
        %v438 = vld [vmem:[%s437] sm:$0xff]
        %v439 = vstv %s436
        %v440 = vmul.f32 %v439, %v438
        %v441 = vadd.f32 %v435, %v440
        %s442 = sld [smem:[#allocation9 + $0x3]]
        %s443 = scalar_lea.vmem %s299, 24 [#allocation6]
        %v444 = vld [vmem:[%s443] sm:$0xff]
        %v445 = vstv %s442
        %v446 = vmul.f32 %v445, %v444
        %v447 = vadd.f32 %v441, %v446
        %s448 = sld [smem:[#allocation9 + $0x4]]
        %s449 = scalar_lea.vmem %s299, 32 [#allocation6]
        %v450 = vld [vmem:[%s449] sm:$0xff]
        %v451 = vstv %s448
        %v452 = vmul.f32 %v451, %v450
        %v453 = vadd.f32 %v447, %v452
        %s454 = sld [smem:[#allocation9 + $0x5]]
        %s455 = scalar_lea.vmem %s299, 40 [#allocation6]
        %v456 = vld [vmem:[%s455] sm:$0xff]
        %v457 = vstv %s454
        %v458 = vmul.f32 %v457, %v456
        %v459 = vadd.f32 %v453, %v458
        %s460 = sld [smem:[#allocation9 + $0x6]]
        %s461 = scalar_lea.vmem %s299, 48 [#allocation6]
        %v462 = vld [vmem:[%s461] sm:$0xff]
        %v463 = vstv %s460
        %v464 = vmul.f32 %v463, %v462
        %v465 = vadd.f32 %v459, %v464
        %s466 = sld [smem:[#allocation9 + $0x7]]
        %s467 = scalar_lea.vmem %s299, 56 [#allocation6]
        %v468 = vld [vmem:[%s467] sm:$0xff]
        %v469 = vstv %s466
        %v470 = vmul.f32 %v469, %v468
        %v471 = vadd.f32 %v465, %v470
        %472 = vst [vmem:[%s343] sm:$0xff] %v471
        %s473 = scalar_lea.vmem %s290, 8 [#allocation2]
        %v474 = vld [vmem:[%s473] sm:$0xff]
        %s475 = sld [smem:[#allocation10 + $0x1]]
        %v476 = vstv %s475
        %v478 = vsel %vm351, %v474, 0
        %480 = vmatprep.subr.mxu0 0.0
        %481 = vmatpush1.msra.mxu0 0.0
        %482 = vmatprep.subr.mxu0 0.0
        %483 = vmatpush1.msra.mxu0 0.0
        %484 = vmatprep.subr.mxu0 0.0
        %485 = vmatpush1.msra.mxu0 0.0
        %486 = vmatprep.subr.mxu0 0.0
        %487 = vmatpush1.msra.mxu0 0.0
        %488 = vmatprep.subr.mxu0 0.0
        %489 = vmatpush1.msra.mxu0 0.0
        %490 = vmatprep.subr.mxu0 0.0
        %491 = vmatpush1.msra.mxu0 0.0
        %492 = vmatprep.subr.mxu0 0.0
        %493 = vmatpush1.msra.mxu0 0.0
        %494 = vmatprep.subr.mxu0 0.0
        %495 = vmatpush1.msra.mxu0 0.0
        %496 = vmatprep.subr.mxu0 0.0
        %497 = vmatpush1.msra.mxu0 0.0
        %498 = vmatprep.subr.mxu0 0.0
        %499 = vmatpush1.msra.mxu0 0.0
        %500 = vmatprep.subr.mxu0 0.0
        %501 = vmatpush1.msra.mxu0 0.0
        %502 = vmatprep.subr.mxu0 0.0
        %503 = vmatpush1.msra.mxu0 0.0
        %504 = vmatprep.subr.mxu0 0.0
        %505 = vmatpush1.msra.mxu0 %v347
        %506 = vmatprep.subr.mxu0 0.0
        %507 = vmatpush1.msra.mxu0 %v346
        %508 = vmatprep.subr.mxu0 0.0
        %509 = vmatpush1.msra.mxu0 %v345
        %510 = vmatprep.subr.mxu0 0.0
        %511 = vmatpush1.msra.mxu0 %v344
        %512 = vmatprep.subr.mxu0 0.0
        %513 = vmatpush2.msra.mxu0 0.0
        %514 = vmatprep.subr.mxu0 0.0
        %515 = vmatpush2.msra.mxu0 0.0
        %516 = vmatprep.subr.mxu0 0.0
        %517 = vmatpush2.msra.mxu0 0.0
        %518 = vmatprep.subr.mxu0 0.0
        %519 = vmatpush2.msra.mxu0 0.0
        %520 = vmatprep.subr.mxu0 0.0
        %521 = vmatpush2.msra.mxu0 0.0
        %522 = vmatprep.subr.mxu0 0.0
        %523 = vmatpush2.msra.mxu0 0.0
        %524 = vmatprep.subr.mxu0 0.0
        %525 = vmatpush2.msra.mxu0 0.0
        %526 = vmatprep.subr.mxu0 0.0
        %527 = vmatpush2.msra.mxu0 0.0
        %528 = vmatprep.subr.mxu0 0.0
        %529 = vmatpush2.msra.mxu0 0.0
        %530 = vmatprep.subr.mxu0 0.0
        %531 = vmatpush2.msra.mxu0 0.0
        %532 = vmatprep.subr.mxu0 0.0
        %533 = vmatpush2.msra.mxu0 0.0
        %534 = vmatprep.subr.mxu0 0.0
        %535 = vmatpush2.msra.mxu0 0.0
        %536 = vmatprep.subr.mxu0 0.0
        %537 = vmatpush2.msra.mxu0 0.0
        %538 = vmatprep.subr.mxu0 0.0
        %539 = vmatpush2.msra.mxu0 0.0
        %540 = vmatprep.subr.mxu0 0.0
        %541 = vmatpush2.msra.mxu0 0.0
        %542 = vmatprep.subr.mxu0 0.0
        %543 = vmatpush2.msra.mxu0 0.0
        %544 = vmatprep.mubr.f32.mxu0 0.0
        %545 = vmatmul.mubr.f32.gmra.mxu0 %v478
        %v546 = vpop.f32.mrf.mxu0
        %v547 = vadd.f32 %v476, %v546
        %v548 = vpop.f32.mrf.mxu0
        %549 = vdwg.mxu0
        %s550 = sld [smem:[#allocation9 + $0x80]]
        %v551 = vld [vmem:[%s299] sm:$0xff]
        %v552 = vstv %s550
        %v553 = vmul.f32 %v552, %v551
        %v554 = vadd.f32 %v547, %v553
        %s555 = sld [smem:[#allocation9 + $0x81]]
        %v556 = vld [vmem:[%s431] sm:$0xff]
        %v557 = vstv %s555
        %v558 = vmul.f32 %v557, %v556
        %v559 = vadd.f32 %v554, %v558
        %s560 = sld [smem:[#allocation9 + $0x82]]
        %v561 = vld [vmem:[%s437] sm:$0xff]
        %v562 = vstv %s560
        %v563 = vmul.f32 %v562, %v561
        %v564 = vadd.f32 %v559, %v563
        %s565 = sld [smem:[#allocation9 + $0x83]]
        %v566 = vld [vmem:[%s443] sm:$0xff]
        %v567 = vstv %s565
        %v568 = vmul.f32 %v567, %v566
        %v569 = vadd.f32 %v564, %v568
        %s570 = sld [smem:[#allocation9 + $0x84]]
        %v571 = vld [vmem:[%s449] sm:$0xff]
        %v572 = vstv %s570
        %v573 = vmul.f32 %v572, %v571
        %v574 = vadd.f32 %v569, %v573
        %s575 = sld [smem:[#allocation9 + $0x85]]
        %v576 = vld [vmem:[%s455] sm:$0xff]
        %v577 = vstv %s575
        %v578 = vmul.f32 %v577, %v576
        %v579 = vadd.f32 %v574, %v578
        %s580 = sld [smem:[#allocation9 + $0x86]]
        %v581 = vld [vmem:[%s461] sm:$0xff]
        %v582 = vstv %s580
        %v583 = vmul.f32 %v582, %v581
        %v584 = vadd.f32 %v579, %v583
        %s585 = sld [smem:[#allocation9 + $0x87]]
        %v586 = vld [vmem:[%s467] sm:$0xff]
        %v587 = vstv %s585
        %v588 = vmul.f32 %v587, %v586
        %v589 = vadd.f32 %v584, %v588
        %s590 = scalar_lea.vmem %s343, 8 [#allocation12]
        %591 = vst [vmem:[%s590] sm:$0xff] %v589
        %s592 = scalar_lea.vmem %s290, 16 [#allocation2]
        %v593 = vld [vmem:[%s592] sm:$0xff]
        %s594 = sld [smem:[#allocation10 + $0x2]]
        %v595 = vstv %s594
        %v597 = vsel %vm351, %v593, 0
        %599 = vmatprep.subr.mxu0 0.0
        %600 = vmatpush1.msra.mxu0 0.0
        %601 = vmatprep.subr.mxu0 0.0
        %602 = vmatpush1.msra.mxu0 0.0
        %603 = vmatprep.subr.mxu0 0.0
        %604 = vmatpush1.msra.mxu0 0.0
        %605 = vmatprep.subr.mxu0 0.0
        %606 = vmatpush1.msra.mxu0 0.0
        %607 = vmatprep.subr.mxu0 0.0
        %608 = vmatpush1.msra.mxu0 0.0
        %609 = vmatprep.subr.mxu0 0.0
        %610 = vmatpush1.msra.mxu0 0.0
        %611 = vmatprep.subr.mxu0 0.0
        %612 = vmatpush1.msra.mxu0 0.0
        %613 = vmatprep.subr.mxu0 0.0
        %614 = vmatpush1.msra.mxu0 0.0
        %615 = vmatprep.subr.mxu0 0.0
        %616 = vmatpush1.msra.mxu0 0.0
        %617 = vmatprep.subr.mxu0 0.0
        %618 = vmatpush1.msra.mxu0 0.0
        %619 = vmatprep.subr.mxu0 0.0
        %620 = vmatpush1.msra.mxu0 0.0
        %621 = vmatprep.subr.mxu0 0.0
        %622 = vmatpush1.msra.mxu0 0.0
        %623 = vmatprep.subr.mxu0 0.0
        %624 = vmatpush1.msra.mxu0 %v347
        %625 = vmatprep.subr.mxu0 0.0
        %626 = vmatpush1.msra.mxu0 %v346
        %627 = vmatprep.subr.mxu0 0.0
        %628 = vmatpush1.msra.mxu0 %v345
        %629 = vmatprep.subr.mxu0 0.0
        %630 = vmatpush1.msra.mxu0 %v344
        %631 = vmatprep.subr.mxu0 0.0
        %632 = vmatpush2.msra.mxu0 0.0
        %633 = vmatprep.subr.mxu0 0.0
        %634 = vmatpush2.msra.mxu0 0.0
        %635 = vmatprep.subr.mxu0 0.0
        %636 = vmatpush2.msra.mxu0 0.0
        %637 = vmatprep.subr.mxu0 0.0
        %638 = vmatpush2.msra.mxu0 0.0
        %639 = vmatprep.subr.mxu0 0.0
        %640 = vmatpush2.msra.mxu0 0.0
        %641 = vmatprep.subr.mxu0 0.0
        %642 = vmatpush2.msra.mxu0 0.0
        %643 = vmatprep.subr.mxu0 0.0
        %644 = vmatpush2.msra.mxu0 0.0
        %645 = vmatprep.subr.mxu0 0.0
        %646 = vmatpush2.msra.mxu0 0.0
        %647 = vmatprep.subr.mxu0 0.0
        %648 = vmatpush2.msra.mxu0 0.0
        %649 = vmatprep.subr.mxu0 0.0
        %650 = vmatpush2.msra.mxu0 0.0
        %651 = vmatprep.subr.mxu0 0.0
        %652 = vmatpush2.msra.mxu0 0.0
        %653 = vmatprep.subr.mxu0 0.0
        %654 = vmatpush2.msra.mxu0 0.0
        %655 = vmatprep.subr.mxu0 0.0
        %656 = vmatpush2.msra.mxu0 0.0
        %657 = vmatprep.subr.mxu0 0.0
        %658 = vmatpush2.msra.mxu0 0.0
        %659 = vmatprep.subr.mxu0 0.0
        %660 = vmatpush2.msra.mxu0 0.0
        %661 = vmatprep.subr.mxu0 0.0
        %662 = vmatpush2.msra.mxu0 0.0
        %663 = vmatprep.mubr.f32.mxu0 0.0
        %664 = vmatmul.mubr.f32.gmra.mxu0 %v597
        %v665 = vpop.f32.mrf.mxu0
        %v666 = vadd.f32 %v595, %v665
        %v667 = vpop.f32.mrf.mxu0
        %668 = vdwg.mxu0
        %s669 = sld [smem:[#allocation9 + $0x100]]
        %v670 = vld [vmem:[%s299] sm:$0xff]
        %v671 = vstv %s669
        %v672 = vmul.f32 %v671, %v670
        %v673 = vadd.f32 %v666, %v672
        %s674 = sld [smem:[#allocation9 + $0x101]]
        %v675 = vld [vmem:[%s431] sm:$0xff]
        %v676 = vstv %s674
        %v677 = vmul.f32 %v676, %v675
        %v678 = vadd.f32 %v673, %v677
        %s679 = sld [smem:[#allocation9 + $0x102]]
        %v680 = vld [vmem:[%s437] sm:$0xff]
        %v681 = vstv %s679
        %v682 = vmul.f32 %v681, %v680
        %v683 = vadd.f32 %v678, %v682
        %s684 = sld [smem:[#allocation9 + $0x103]]
        %v685 = vld [vmem:[%s443] sm:$0xff]
        %v686 = vstv %s684
        %v687 = vmul.f32 %v686, %v685
        %v688 = vadd.f32 %v683, %v687
        %s689 = sld [smem:[#allocation9 + $0x104]]
        %v690 = vld [vmem:[%s449] sm:$0xff]
        %v691 = vstv %s689
        %v692 = vmul.f32 %v691, %v690
        %v693 = vadd.f32 %v688, %v692
        %s694 = sld [smem:[#allocation9 + $0x105]]
        %v695 = vld [vmem:[%s455] sm:$0xff]
        %v696 = vstv %s694
        %v697 = vmul.f32 %v696, %v695
        %v698 = vadd.f32 %v693, %v697
        %s699 = sld [smem:[#allocation9 + $0x106]]
        %v700 = vld [vmem:[%s461] sm:$0xff]
        %v701 = vstv %s699
        %v702 = vmul.f32 %v701, %v700
        %v703 = vadd.f32 %v698, %v702
        %s704 = sld [smem:[#allocation9 + $0x107]]
        %v705 = vld [vmem:[%s467] sm:$0xff]
        %v706 = vstv %s704
        %v707 = vmul.f32 %v706, %v705
        %v708 = vadd.f32 %v703, %v707
        %s709 = scalar_lea.vmem %s343, 16 [#allocation12]
        %710 = vst [vmem:[%s709] sm:$0xff] %v708
        %s711 = scalar_lea.vmem %s290, 24 [#allocation2]
        %v712 = vld [vmem:[%s711] sm:$0xff]
        %s713 = sld [smem:[#allocation10 + $0x3]]
        %v714 = vstv %s713
        %v716 = vsel %vm351, %v712, 0
        %718 = vmatprep.subr.mxu0 0.0
        %719 = vmatpush1.msra.mxu0 0.0
        %720 = vmatprep.subr.mxu0 0.0
        %721 = vmatpush1.msra.mxu0 0.0
        %722 = vmatprep.subr.mxu0 0.0
        %723 = vmatpush1.msra.mxu0 0.0
        %724 = vmatprep.subr.mxu0 0.0
        %725 = vmatpush1.msra.mxu0 0.0
        %726 = vmatprep.subr.mxu0 0.0
        %727 = vmatpush1.msra.mxu0 0.0
        %728 = vmatprep.subr.mxu0 0.0
        %729 = vmatpush1.msra.mxu0 0.0
        %730 = vmatprep.subr.mxu0 0.0
        %731 = vmatpush1.msra.mxu0 0.0
        %732 = vmatprep.subr.mxu0 0.0
        %733 = vmatpush1.msra.mxu0 0.0
        %734 = vmatprep.subr.mxu0 0.0
        %735 = vmatpush1.msra.mxu0 0.0
        %736 = vmatprep.subr.mxu0 0.0
        %737 = vmatpush1.msra.mxu0 0.0
        %738 = vmatprep.subr.mxu0 0.0
        %739 = vmatpush1.msra.mxu0 0.0
        %740 = vmatprep.subr.mxu0 0.0
        %741 = vmatpush1.msra.mxu0 0.0
        %742 = vmatprep.subr.mxu0 0.0
        %743 = vmatpush1.msra.mxu0 %v347
        %744 = vmatprep.subr.mxu0 0.0
        %745 = vmatpush1.msra.mxu0 %v346
        %746 = vmatprep.subr.mxu0 0.0
        %747 = vmatpush1.msra.mxu0 %v345
        %748 = vmatprep.subr.mxu0 0.0
        %749 = vmatpush1.msra.mxu0 %v344
        %750 = vmatprep.subr.mxu0 0.0
        %751 = vmatpush2.msra.mxu0 0.0
        %752 = vmatprep.subr.mxu0 0.0
        %753 = vmatpush2.msra.mxu0 0.0
        %754 = vmatprep.subr.mxu0 0.0
        %755 = vmatpush2.msra.mxu0 0.0
        %756 = vmatprep.subr.mxu0 0.0
        %757 = vmatpush2.msra.mxu0 0.0
        %758 = vmatprep.subr.mxu0 0.0
        %759 = vmatpush2.msra.mxu0 0.0
        %760 = vmatprep.subr.mxu0 0.0
        %761 = vmatpush2.msra.mxu0 0.0
        %762 = vmatprep.subr.mxu0 0.0
        %763 = vmatpush2.msra.mxu0 0.0
        %764 = vmatprep.subr.mxu0 0.0
        %765 = vmatpush2.msra.mxu0 0.0
        %766 = vmatprep.subr.mxu0 0.0
        %767 = vmatpush2.msra.mxu0 0.0
        %768 = vmatprep.subr.mxu0 0.0
        %769 = vmatpush2.msra.mxu0 0.0
        %770 = vmatprep.subr.mxu0 0.0
        %771 = vmatpush2.msra.mxu0 0.0
        %772 = vmatprep.subr.mxu0 0.0
        %773 = vmatpush2.msra.mxu0 0.0
        %774 = vmatprep.subr.mxu0 0.0
        %775 = vmatpush2.msra.mxu0 0.0
        %776 = vmatprep.subr.mxu0 0.0
        %777 = vmatpush2.msra.mxu0 0.0
        %778 = vmatprep.subr.mxu0 0.0
        %779 = vmatpush2.msra.mxu0 0.0
        %780 = vmatprep.subr.mxu0 0.0
        %781 = vmatpush2.msra.mxu0 0.0
        %782 = vmatprep.mubr.f32.mxu0 0.0
        %783 = vmatmul.mubr.f32.gmra.mxu0 %v716
        %v784 = vpop.f32.mrf.mxu0
        %v785 = vadd.f32 %v714, %v784
        %v786 = vpop.f32.mrf.mxu0
        %787 = vdwg.mxu0
        %s788 = sld [smem:[#allocation9 + $0x180]]
        %v789 = vld [vmem:[%s299] sm:$0xff]
        %v790 = vstv %s788
        %v791 = vmul.f32 %v790, %v789
        %v792 = vadd.f32 %v785, %v791
        %s793 = sld [smem:[#allocation9 + $0x181]]
        %v794 = vld [vmem:[%s431] sm:$0xff]
        %v795 = vstv %s793
        %v796 = vmul.f32 %v795, %v794
        %v797 = vadd.f32 %v792, %v796
        %s798 = sld [smem:[#allocation9 + $0x182]]
        %v799 = vld [vmem:[%s437] sm:$0xff]
        %v800 = vstv %s798
        %v801 = vmul.f32 %v800, %v799
        %v802 = vadd.f32 %v797, %v801
        %s803 = sld [smem:[#allocation9 + $0x183]]
        %v804 = vld [vmem:[%s443] sm:$0xff]
        %v805 = vstv %s803
        %v806 = vmul.f32 %v805, %v804
        %v807 = vadd.f32 %v802, %v806
        %s808 = sld [smem:[#allocation9 + $0x184]]
        %v809 = vld [vmem:[%s449] sm:$0xff]
        %v810 = vstv %s808
        %v811 = vmul.f32 %v810, %v809
        %v812 = vadd.f32 %v807, %v811
        %s813 = sld [smem:[#allocation9 + $0x185]]
        %v814 = vld [vmem:[%s455] sm:$0xff]
        %v815 = vstv %s813
        %v816 = vmul.f32 %v815, %v814
        %v817 = vadd.f32 %v812, %v816
        %s818 = sld [smem:[#allocation9 + $0x186]]
        %v819 = vld [vmem:[%s461] sm:$0xff]
        %v820 = vstv %s818
        %v821 = vmul.f32 %v820, %v819
        %v822 = vadd.f32 %v817, %v821
        %s823 = sld [smem:[#allocation9 + $0x187]]
        %v824 = vld [vmem:[%s467] sm:$0xff]
        %v825 = vstv %s823
        %v826 = vmul.f32 %v825, %v824
        %v827 = vadd.f32 %v822, %v826
        %s828 = scalar_lea.vmem %s343, 24 [#allocation12]
        %829 = vst [vmem:[%s828] sm:$0xff] %v827
        %s830 = sand.u32 %s168, 1
        %s831 = scalar_lea.sflag [#allocation4], %s830
        %s832 = sand.u32 %s168, 1
        %s833 = smul.addr %s832, 32
        %s834 = scalar_lea.vmem [#allocation12], %s833
        // Predicated region
        $region61: #{tpu_custom_call.1} parent=39 // pred_check
          %p835 = pneg %p178
        $region62: #{tpu_custom_call.1} parent=39 // pred_check_branch
          %837 = sbr.rel (%p835) target = $region64
        $region63: #{tpu_custom_call.1} parent=39 // pred_region
          %s839 = ssub.s32 512, 512
          %840 = vsyncadd %s831, %s839
          %s841 = smul.addr %s31, 4
          %s842 = sadd.s32 %s32, %s841
          %s843 = smul.addr %s842, 128
          %s844 = scalar_lea.hbm %s5, %s843
          %s845 = sshll.u32 %s834, 4
          %s846 = int_to_ptr.vmem [resolvable:$true] %s845
          %851 = dma.vmem_to_hbm [thread:$0]  %s846, 512, %s844, %s831, 128, 128, 8
        $region64: #{tpu_custom_call.1} parent=39 // pred_fallthru
          _
      $region40: #{tpu_custom_call.1} parent=5 // pred_fallthru
        _
      %p852 = scmp.le.s32.totalorder 2, %s22
      // Predicated region
      $region65: #{tpu_custom_call.1} parent=5 // pred_check
        %p853 = pneg %p852
      $region66: #{tpu_custom_call.1} parent=5 // pred_check_branch
        %855 = sbr.rel (%p853) target = $region68
      $region67: #{tpu_custom_call.1} parent=5 // pred_region
        %s856 = ssub.s32 %s22, 2
        // Predicated region
        $region69: #{tpu_custom_call.1} parent=67 // pred_check
          %p857 = pneg %p184
        $region70: #{tpu_custom_call.1} parent=67 // pred_check_branch
          %859 = sbr.rel (%p857) target = $region72
        $region71: #{tpu_custom_call.1} parent=67 // pred_region
          %s860 = sand.u32 %s169, 1
          %s861 = scalar_lea.sflag [#allocation4], %s860
          %s862 = sand.u32 %s169, 1
          %s863 = smul.addr %s862, 32
          %s864 = scalar_lea.vmem [#allocation12], %s863
          %865 = dma.done %s861, 512
        $region72: #{tpu_custom_call.1} parent=67 // pred_fallthru
          _
      $region68: #{tpu_custom_call.1} parent=5 // pred_fallthru
        _
    $region6: #{tpu_custom_call.1} parent=1 // loop_footer
      %s26 = sadd.s32 1, %s22
    $region7: #{tpu_custom_call.1} parent=1 // loop_footer_branch
      %21 = sbr.rel target = $region3
    $region8: #{tpu_custom_call.1} parent=1 // loop_exit
      _
    %866 = vsyncpa [#allocation3], 1
    %s867 = scalar_lea.sflag [#allocation3], 1
    %868 = vsyncpa %s867, 1
    %869 = vsyncpa [#allocation7], 1
    %s870 = scalar_lea.sflag [#allocation7], 1
    %871 = vsyncpa %s870, 1
    %872 = vsyncpa [#allocation4], 1
    %s873 = scalar_lea.sflag [#allocation4], 1
    %874 = vsyncpa %s873, 1
    %875 = vsyncpa [#allocation5], 1
    %s876 = scalar_lea.sflag [#allocation5], 1
    %877 = vsyncpa %s876, 1
    %878 = vsyncpa [#allocation11], 1

</llo_original>
